<compile_context>
chip_gen: v7x
topology: tpu7x:2x2x1
jax: 0.10.0
libtpu: 0.0.40
codegen_flags: <defaults>
</compile_context>

<pallas_src>
import functools

import jax
import jax.numpy as jnp
from jax.experimental import pallas as pl
from jax.experimental.pallas import tpu as pltpu

LANE = 128
SUBLANE = 8


def _round_up(n, m):
    return ((n + m - 1) // m) * m


def encoder_kernel(x_ref, y_ref, w1x_ref, w1y_ref, b1_ref,
                   wout_ref, bout_ref, out_ref):
    # hidden = tanh(x @ W1x + y @ W1y + b1)
    # (split-K form of [x|y] @ W1: the concatenated activation never exists)
    h = jnp.dot(x_ref[...], w1x_ref[...], preferred_element_type=jnp.float32)
    h = h + jnp.dot(y_ref[...], w1y_ref[...], preferred_element_type=jnp.float32)
    h = jnp.tanh(h + b1_ref[...].astype(jnp.float32))   # EUP op, overlaps MXU

    # Fused [mu | log_var | zero-pad] projection: one MXU pass, lane-dense store.
    h = h.astype(wout_ref.dtype)
    out = jnp.dot(h, wout_ref[...], preferred_element_type=jnp.float32)
    out = out + bout_ref[...].astype(jnp.float32)
    out_ref[...] = out.astype(out_ref.dtype)


@functools.partial(jax.jit, static_argnames=("compute_dtype", "block_b"))
def encoder_forward(x, y, params, *, compute_dtype=jnp.bfloat16, block_b=256):
    """x: (B, input_dim), y: (B, condition_dim) -> (mu, log_var), each (B, latent_dim)."""
    w1, b1, wmu, bmu, wlv, blv = params
    B = x.shape[0]
    input_dim = x.shape[1]
    condition_dim = y.shape[1]
    hidden_dim = w1.shape[1]
    latent_dim = wmu.shape[1]

    # --- fuse mu / log_var heads; pad output width to a 128-lane multiple ---
    out_cols = 2 * latent_dim
    out_pad = _round_up(out_cols, LANE)
    wout = jnp.concatenate([wmu, wlv], axis=1)
    bout = jnp.concatenate([bmu, blv], axis=1)
    if out_pad != out_cols:
        wout = jnp.pad(wout, ((0, 0), (0, out_pad - out_cols)))
        bout = jnp.pad(bout, ((0, 0), (0, out_pad - out_cols)))

    # --- split W1 so concat(x, y) is never materialized ---
    w1x = w1[:input_dim]
    w1y = w1[input_dim:]

    # --- cast operands to the MXU compute dtype (accumulation stays f32) ---
    cast = lambda a: a.astype(compute_dtype)
    xc, yc = cast(x), cast(y)
    w1x_c, w1y_c, b1_c = cast(w1x), cast(w1y), cast(b1)
    wout_c, bout_c = cast(wout), cast(bout)

    # --- batch tiling (sublane-aligned); pad batch if needed ---
    tb = min(_round_up(B, SUBLANE), block_b)
    pb = _round_up(B, tb)
    if pb != B:
        xc = jnp.pad(xc, ((0, pb - B), (0, 0)))
        yc = jnp.pad(yc, ((0, pb - B), (0, 0)))
    nb = pb // tb

    batch_spec = lambda f: pl.BlockSpec((tb, f), lambda i: (i, 0))
    resident = lambda r, c: pl.BlockSpec((r, c), lambda i: (0, 0))

    bytes_accessed = (
        xc.size * xc.dtype.itemsize + yc.size * yc.dtype.itemsize
        + w1x_c.size * w1x_c.dtype.itemsize + w1y_c.size * w1y_c.dtype.itemsize
        + b1_c.size * b1_c.dtype.itemsize
        + wout_c.size * wout_c.dtype.itemsize + bout_c.size * bout_c.dtype.itemsize
        + pb * out_pad * 4
    )
    cost = pl.CostEstimate(
        flops=2 * pb * (input_dim + condition_dim) * hidden_dim
        + 2 * pb * hidden_dim * out_pad,
        transcendentals=pb * hidden_dim,
        bytes_accessed=bytes_accessed,
    )

    out = pl.pallas_call(
        encoder_kernel,
        out_shape=jax.ShapeDtypeStruct((pb, out_pad), jnp.float32),
        grid_spec=pl.GridSpec(
            grid=(nb,),
            in_specs=[
                batch_spec(input_dim),                 # x tile
                batch_spec(condition_dim),             # y tile
                resident(input_dim, hidden_dim),       # W1[:input_dim]
                resident(condition_dim, hidden_dim),   # W1[input_dim:]
                resident(1, hidden_dim),               # b1
                resident(hidden_dim, out_pad),         # fused [Wmu | Wlv | 0]
                resident(1, out_pad),                  # fused [bmu | blv | 0]
            ],
            out_specs=pl.BlockSpec((tb, out_pad), lambda i: (i, 0)),
        ),
        compiler_params=pltpu.CompilerParams(
            dimension_semantics=("parallel",),
        ),
        cost_estimate=cost,
    )(xc, yc, w1x_c, w1y_c, b1_c, wout_c, bout_c)

    mu = out[:B, :latent_dim]
    log_var = out[:B, latent_dim:2 * latent_dim]
    return mu, log_var


def init_params(key, input_dim, condition_dim, hidden_dim, latent_dim):
    """Deterministic synthetic parameters mimicking nn.Linear shapes
    (stored transposed: (in_features, out_features))."""
    ks = jax.random.split(key, 6)
    scale = 0.1
    w1 = scale * jax.random.normal(ks[0], (input_dim + condition_dim, hidden_dim), jnp.float32)
    b1 = scale * jax.random.normal(ks[1], (1, hidden_dim), jnp.float32)
    wmu = scale * jax.random.normal(ks[2], (hidden_dim, latent_dim), jnp.float32)
    bmu = scale * jax.random.normal(ks[3], (1, latent_dim), jnp.float32)
    wlv = scale * jax.random.normal(ks[4], (hidden_dim, latent_dim), jnp.float32)
    blv = scale * jax.random.normal(ks[5], (1, latent_dim), jnp.float32)
    return (w1, b1, wmu, bmu, wlv, blv)


def encoder_ref(x, y, params):
    """Pure-JAX f32 reference matching the PyTorch module."""
    w1, b1, wmu, bmu, wlv, blv = params
    xy = jnp.concatenate([x, y], axis=1)
    h = jnp.tanh(xy @ w1 + b1)
    return h @ wmu + bmu, h @ wlv + blv


if __name__ == "__main__":
    batch = 8
    input_dim = 16
    condition_dim = 8
    hidden_dim = 32
    latent_dim = 8

    key = jax.random.PRNGKey(0)
    kx, ky, kp = jax.random.split(key, 3)
    x = jax.random.normal(kx, (batch, input_dim), jnp.float32)
    y = jax.random.normal(ky, (batch, condition_dim), jnp.float32)
    params = init_params(kp, input_dim, condition_dim, hidden_dim, latent_dim)

    mu_ref, lv_ref = encoder_ref(x, y, params)

    # Exact-semantics path (f32 compute, f32 accumulate).
    mu, log_var = encoder_forward(x, y, params, compute_dtype=jnp.float32)
    jax.block_until_ready((mu, log_var))
    assert mu.shape == (batch, latent_dim) and log_var.shape == (batch, latent_dim)
    assert jnp.allclose(mu, mu_ref, atol=1e-5), "mu mismatch (f32)"
    assert jnp.allclose(log_var, lv_ref, atol=1e-5), "log_var mismatch (f32)"

    # MXU-friendly path (bf16 inputs, f32 accumulation) — looser tolerance.
    mu_bf, lv_bf = encoder_forward(x, y, params, compute_dtype=jnp.bfloat16)
    jax.block_until_ready((mu_bf, lv_bf))
    assert jnp.allclose(mu_bf, mu_ref, atol=5e-2, rtol=5e-2), "mu mismatch (bf16)"
    assert jnp.allclose(lv_bf, lv_ref, atol=5e-2, rtol=5e-2), "log_var mismatch (bf16)"

    print("KERNEL_OK")
</pallas_src>

<mosaic_0001>
module attributes {stable_mosaic.version = 11 : i64} {
  func.func @encoder_kernel(%arg0: i32, %arg1: memref<8x16xf32, #tpu.memory_space<vmem>>, %arg2: memref<8x8xf32, #tpu.memory_space<vmem>>, %arg3: memref<16x32xf32, #tpu.memory_space<vmem>>, %arg4: memref<8x32xf32, #tpu.memory_space<vmem>>, %arg5: memref<1x32xf32, #tpu.memory_space<vmem>>, %arg6: memref<32x128xf32, #tpu.memory_space<vmem>>, %arg7: memref<1x128xf32, #tpu.memory_space<vmem>>, %arg8: memref<8x128xf32, #tpu.memory_space<vmem>>) attributes {dimension_semantics = [#tpu.dimension_semantics<parallel>], iteration_bounds = array<i64: 1>, scalar_prefetch = 0 : i64, scratch_operands = 0 : i64, tpu.core_type = #tpu.core_type<tc>, window_params = [{transform_indices = @transform_0, window_bounds = array<i64: 8, 16>}, {transform_indices = @transform_1, window_bounds = array<i64: 8, 8>}, {pipeline_mode = #tpu.pipeline_mode<synchronous>, transform_indices = @transform_2, window_bounds = array<i64: 16, 32>}, {pipeline_mode = #tpu.pipeline_mode<synchronous>, transform_indices = @transform_3, window_bounds = array<i64: 8, 32>}, {pipeline_mode = #tpu.pipeline_mode<synchronous>, transform_indices = @transform_4, window_bounds = array<i64: 1, 32>}, {pipeline_mode = #tpu.pipeline_mode<synchronous>, transform_indices = @transform_5, window_bounds = array<i64: 32, 128>}, {pipeline_mode = #tpu.pipeline_mode<synchronous>, transform_indices = @transform_6, window_bounds = array<i64: 1, 128>}, {transform_indices = @transform_7, window_bounds = array<i64: 8, 128>}]} {
    %c0 = arith.constant 0 : index
    %c0_0 = arith.constant 0 : index
    %0 = vector.load %arg1[%c0, %c0_0] : memref<8x16xf32, #tpu.memory_space<vmem>>, vector<8x16xf32>
    %c0_1 = arith.constant 0 : index
    %c0_2 = arith.constant 0 : index
    %1 = vector.load %arg3[%c0_1, %c0_2] : memref<16x32xf32, #tpu.memory_space<vmem>>, vector<16x32xf32>
    %cst = arith.constant dense<0.000000e+00> : vector<8x32xf32>
    %2 = tpu.matmul %0, %1, %cst {dimension_numbers = #tpu.dot_dimension_numbers<[1], [0], [0], [1], [0, 0, 1, 1], [], []>} : vector<8x16xf32>, vector<16x32xf32>, vector<8x32xf32> -> vector<8x32xf32>
    %c0_3 = arith.constant 0 : index
    %c0_4 = arith.constant 0 : index
    %3 = vector.load %arg2[%c0_3, %c0_4] : memref<8x8xf32, #tpu.memory_space<vmem>>, vector<8x8xf32>
    %c0_5 = arith.constant 0 : index
    %c0_6 = arith.constant 0 : index
    %4 = vector.load %arg4[%c0_5, %c0_6] : memref<8x32xf32, #tpu.memory_space<vmem>>, vector<8x32xf32>
    %cst_7 = arith.constant dense<0.000000e+00> : vector<8x32xf32>
    %5 = tpu.matmul %3, %4, %cst_7 {dimension_numbers = #tpu.dot_dimension_numbers<[1], [0], [0], [1], [0, 0, 1, 1], [], []>} : vector<8x8xf32>, vector<8x32xf32>, vector<8x32xf32> -> vector<8x32xf32>
    %6 = arith.addf %2, %5 : vector<8x32xf32>
    %c0_8 = arith.constant 0 : index
    %c0_9 = arith.constant 0 : index
    %7 = vector.load %arg5[%c0_8, %c0_9] : memref<1x32xf32, #tpu.memory_space<vmem>>, vector<1x32xf32>
    %8 = vector.broadcast %7 : vector<1x32xf32> to vector<8x32xf32>
    %9 = arith.addf %6, %8 : vector<8x32xf32>
    %10 = math.tanh %9 : vector<8x32xf32>
    %c0_10 = arith.constant 0 : index
    %c0_11 = arith.constant 0 : index
    %11 = vector.load %arg6[%c0_10, %c0_11] : memref<32x128xf32, #tpu.memory_space<vmem>>, vector<32x128xf32>
    %cst_12 = arith.constant dense<0.000000e+00> : vector<8x128xf32>
    %12 = tpu.matmul %10, %11, %cst_12 {dimension_numbers = #tpu.dot_dimension_numbers<[1], [0], [0], [1], [0, 0, 1, 1], [], []>} : vector<8x32xf32>, vector<32x128xf32>, vector<8x128xf32> -> vector<8x128xf32>
    %c0_13 = arith.constant 0 : index
    %c0_14 = arith.constant 0 : index
    %13 = vector.load %arg7[%c0_13, %c0_14] : memref<1x128xf32, #tpu.memory_space<vmem>>, vector<1x128xf32>
    %14 = vector.broadcast %13 : vector<1x128xf32> to vector<8x128xf32>
    %15 = arith.addf %12, %14 : vector<8x128xf32>
    %c0_15 = arith.constant 0 : index
    %c0_16 = arith.constant 0 : index
    %16 = vector.load %arg8[%c0_15, %c0_16] : memref<8x128xf32, #tpu.memory_space<vmem>>, vector<8x128xf32>
    tpu.vector_store %arg8[%c0_15, %c0_16], %15 {strides = array<i32>} : memref<8x128xf32, #tpu.memory_space<vmem>>, vector<8x128xf32>,
    return
  }
  func.func @transform_0(%arg0: i32) -> (i32, i32) {
    %c0_i32 = arith.constant 0 : i32
    %c0_i32_0 = arith.constant 0 : i32
    return %arg0, %c0_i32 : i32, i32
  }
  func.func @transform_1(%arg0: i32) -> (i32, i32) {
    %c0_i32 = arith.constant 0 : i32
    %c0_i32_0 = arith.constant 0 : i32
    return %arg0, %c0_i32 : i32, i32
  }
  func.func @transform_2(%arg0: i32) -> (i32, i32) {
    %c0_i32 = arith.constant 0 : i32
    %c0_i32_0 = arith.constant 0 : i32
    %c0_i32_1 = arith.constant 0 : i32
    return %c0_i32, %c0_i32_0 : i32, i32
  }
  func.func @transform_3(%arg0: i32) -> (i32, i32) {
    %c0_i32 = arith.constant 0 : i32
    %c0_i32_0 = arith.constant 0 : i32
    %c0_i32_1 = arith.constant 0 : i32
    return %c0_i32, %c0_i32_0 : i32, i32
  }
  func.func @transform_4(%arg0: i32) -> (i32, i32) {
    %c0_i32 = arith.constant 0 : i32
    %c0_i32_0 = arith.constant 0 : i32
    %c0_i32_1 = arith.constant 0 : i32
    return %c0_i32, %c0_i32_0 : i32, i32
  }
  func.func @transform_5(%arg0: i32) -> (i32, i32) {
    %c0_i32 = arith.constant 0 : i32
    %c0_i32_0 = arith.constant 0 : i32
    %c0_i32_1 = arith.constant 0 : i32
    return %c0_i32, %c0_i32_0 : i32, i32
  }
  func.func @transform_6(%arg0: i32) -> (i32, i32) {
    %c0_i32 = arith.constant 0 : i32
    %c0_i32_0 = arith.constant 0 : i32
    %c0_i32_1 = arith.constant 0 : i32
    return %c0_i32, %c0_i32_0 : i32, i32
  }
  func.func @transform_7(%arg0: i32) -> (i32, i32) {
    %c0_i32 = arith.constant 0 : i32
    %c0_i32_0 = arith.constant 0 : i32
    return %arg0, %c0_i32 : i32, i32
  }
}

</mosaic_0001>

<llo_original>
// kernel: encoder_forward.1
$region0: #{encoder_forward.1}
  #allocation0 [shape = 'u32[]', space=smem, size = 0x4, offset = 0x4, fixed_abs, tag = 'smem constant byte address 0x4 - core index']
  #allocation1 [shape = 'u32[144,128]{1,0:T(1,128)}', space=vmem, size = 0x12000, scoped, tag = 'internal scratch']
  %s0 = inlined_call_operand.vmem [shape: f32[8,16], index: 0, kind: input, shape index: {}]
  %s1 = inlined_call_operand.vmem [shape: f32[8,8], index: 1, kind: input, shape index: {}]
  %s2 = inlined_call_operand.vmem [shape: f32[16,32], index: 2, kind: input, shape index: {}]
  %s3 = inlined_call_operand.vmem [shape: f32[8,32], index: 3, kind: input, shape index: {}]
  %s4 = inlined_call_operand.vmem [shape: f32[1,32], index: 4, kind: input, shape index: {}]
  %s5 = inlined_call_operand.vmem [shape: f32[32,128], index: 5, kind: input, shape index: {}]
  %s6 = inlined_call_operand.vmem [shape: f32[1,128], index: 6, kind: input, shape index: {}]
  %s7 = inlined_call_operand.vmem [shape: f32[8,128], index: 7, kind: output, shape index: {}]
  %s8 = sld [smem:[#allocation0]]
  $region38: #{encoder_forward.1} parent=0
    _
  %s10 = ssub.s32 1, %s8
  %s11 = scalar_select 0, %s10, %s8
  // Predicated region
  $region2: #{encoder_forward.1} parent=0 // pred_check
    _
  $region3: #{encoder_forward.1} parent=0 // pred_check_branch
    %13 = sbr.rel (0) target = $region5
  $region4: #{encoder_forward.1} parent=0 // pred_region
    _
  $region5: #{encoder_forward.1} parent=0 // pred_fallthru
    _
  // Predicated region
  $region6: #{encoder_forward.1} parent=0 // pred_check
    _
  $region7: #{encoder_forward.1} parent=0 // pred_check_branch
    %15 = sbr.rel (0) target = $region9
  $region8: #{encoder_forward.1} parent=0 // pred_region
    _
  $region9: #{encoder_forward.1} parent=0 // pred_fallthru
    _
  // Predicated region
  $region10: #{encoder_forward.1} parent=0 // pred_check
    _
  $region11: #{encoder_forward.1} parent=0 // pred_check_branch
    %17 = sbr.rel (0) target = $region13
  $region12: #{encoder_forward.1} parent=0 // pred_region
    _
  $region13: #{encoder_forward.1} parent=0 // pred_fallthru
    _
  // Predicated region
  $region14: #{encoder_forward.1} parent=0 // pred_check
    _
  $region15: #{encoder_forward.1} parent=0 // pred_check_branch
    %19 = sbr.rel (0) target = $region17
  $region16: #{encoder_forward.1} parent=0 // pred_region
    _
  $region17: #{encoder_forward.1} parent=0 // pred_fallthru
    _
  // Predicated region
  $region18: #{encoder_forward.1} parent=0 // pred_check
    _
  $region19: #{encoder_forward.1} parent=0 // pred_check_branch
    %21 = sbr.rel (0) target = $region21
  $region20: #{encoder_forward.1} parent=0 // pred_region
    _
  $region21: #{encoder_forward.1} parent=0 // pred_fallthru
    _
  // Predicated region
  $region22: #{encoder_forward.1} parent=0 // pred_check
    _
  $region23: #{encoder_forward.1} parent=0 // pred_check_branch
    %23 = sbr.rel (0) target = $region25
  $region24: #{encoder_forward.1} parent=0 // pred_region
    _
  $region25: #{encoder_forward.1} parent=0 // pred_fallthru
    _
  // Predicated region
  $region26: #{encoder_forward.1} parent=0 // pred_check
    _
  $region27: #{encoder_forward.1} parent=0 // pred_check_branch
    %25 = sbr.rel (0) target = $region29
  $region28: #{encoder_forward.1} parent=0 // pred_region
    _
  $region29: #{encoder_forward.1} parent=0 // pred_fallthru
    _
  %v26 = vld [vmem:[%s0] sm:$0xff]
  %v27 = vld [vmem:[%s2] sm:$0xff]
  %v28 = vld [vmem:[%s2 + $0x8] sm:$0xff]
  %v29 = vld [vmem:[%s1] sm:$0xff]
  %v30 = vld [vmem:[%s3] sm:$0xff]
  %vm31 = vcmask 64512
  %v33 = vsel %vm31, %v29, 0
  %35 = vmatprep.subr.mxu0 0.0
  %36 = vmatpush1.msra.mxu0 %v30
  %37 = vmatprep.subr.mxu0 0.0
  %38 = vmatpush1.msra.mxu0 0.0
  %39 = vmatprep.subr.mxu0 0.0
  %40 = vmatpush1.msra.mxu0 0.0
  %41 = vmatprep.subr.mxu0 0.0
  %42 = vmatpush1.msra.mxu0 0.0
  %43 = vmatprep.subr.mxu0 0.0
  %44 = vmatpush1.msra.mxu0 0.0
  %45 = vmatprep.subr.mxu0 0.0
  %46 = vmatpush1.msra.mxu0 0.0
  %47 = vmatprep.subr.mxu0 0.0
  %48 = vmatpush1.msra.mxu0 0.0
  %49 = vmatprep.subr.mxu0 0.0
  %50 = vmatpush1.msra.mxu0 0.0
  %51 = vmatprep.subr.mxu0 0.0
  %52 = vmatpush1.msra.mxu0 0.0
  %53 = vmatprep.subr.mxu0 0.0
  %54 = vmatpush1.msra.mxu0 0.0
  %55 = vmatprep.subr.mxu0 0.0
  %56 = vmatpush1.msra.mxu0 0.0
  %57 = vmatprep.subr.mxu0 0.0
  %58 = vmatpush1.msra.mxu0 0.0
  %59 = vmatprep.subr.mxu0 0.0
  %60 = vmatpush1.msra.mxu0 0.0
  %61 = vmatprep.subr.mxu0 0.0
  %62 = vmatpush1.msra.mxu0 0.0
  %63 = vmatprep.subr.mxu0 0.0
  %64 = vmatpush1.msra.mxu0 0.0
  %65 = vmatprep.subr.mxu0 0.0
  %66 = vmatpush1.msra.mxu0 0.0
  %67 = vmatprep.subr.mxu0 0.0
  %68 = vmatpush1.msra.mxu0 0.0
  %69 = vmatprep.subr.mxu0 0.0
  %70 = vmatpush1.msra.mxu0 0.0
  %71 = vmatprep.subr.mxu0 0.0
  %72 = vmatpush1.msra.mxu0 0.0
  %73 = vmatprep.subr.mxu0 0.0
  %74 = vmatpush1.msra.mxu0 0.0
  %75 = vmatprep.subr.mxu0 0.0
  %76 = vmatpush1.msra.mxu0 0.0
  %77 = vmatprep.subr.mxu0 0.0
  %78 = vmatpush1.msra.mxu0 0.0
  %79 = vmatprep.subr.mxu0 0.0
  %80 = vmatpush1.msra.mxu0 0.0
  %81 = vmatprep.subr.mxu0 0.0
  %82 = vmatpush1.msra.mxu0 0.0
  %83 = vmatprep.subr.mxu0 0.0
  %84 = vmatpush1.msra.mxu0 0.0
  %85 = vmatprep.subr.mxu0 0.0
  %86 = vmatpush1.msra.mxu0 0.0
  %87 = vmatprep.subr.mxu0 0.0
  %88 = vmatpush1.msra.mxu0 0.0
  %89 = vmatprep.subr.mxu0 0.0
  %90 = vmatpush1.msra.mxu0 0.0
  %91 = vmatprep.subr.mxu0 0.0
  %92 = vmatpush1.msra.mxu0 0.0
  %93 = vmatprep.subr.mxu0 0.0
  %94 = vmatpush1.msra.mxu0 0.0
  %95 = vmatprep.subr.mxu0 0.0
  %96 = vmatpush1.msra.mxu0 0.0
  %97 = vmatprep.subr.mxu0 0.0
  %98 = vmatpush1.msra.mxu0 0.0
  %99 = vmatprep.mubr.f32.mxu0 0.0
  %100 = vmatmul.mubr.f32.gmra.mrb[0].mxu0 %v33
  %v101 = vpop.f32.mrb[0].mxu0
  %v102 = vadd.f32 0.0, %v101
  %v103 = vpop.f32.mrb[0].mxu0
  %104 = vdwg.mxu0
  %vm105 = vcmask 130048
  %v107 = vsel %vm105, %v26, 0
  %109 = vmatprep.subr.mxu0 0.0
  %110 = vmatpush1.msra.mxu0 %v27
  %111 = vmatprep.subr.mxu0 0.0
  %112 = vmatpush1.msra.mxu0 %v28
  %113 = vmatprep.subr.mxu0 0.0
  %114 = vmatpush1.msra.mxu0 0.0
  %115 = vmatprep.subr.mxu0 0.0
  %116 = vmatpush1.msra.mxu0 0.0
  %117 = vmatprep.subr.mxu0 0.0
  %118 = vmatpush1.msra.mxu0 0.0
  %119 = vmatprep.subr.mxu0 0.0
  %120 = vmatpush1.msra.mxu0 0.0
  %121 = vmatprep.subr.mxu0 0.0
  %122 = vmatpush1.msra.mxu0 0.0
  %123 = vmatprep.subr.mxu0 0.0
  %124 = vmatpush1.msra.mxu0 0.0
  %125 = vmatprep.subr.mxu0 0.0
  %126 = vmatpush1.msra.mxu0 0.0
  %127 = vmatprep.subr.mxu0 0.0
  %128 = vmatpush1.msra.mxu0 0.0
  %129 = vmatprep.subr.mxu0 0.0
  %130 = vmatpush1.msra.mxu0 0.0
  %131 = vmatprep.subr.mxu0 0.0
  %132 = vmatpush1.msra.mxu0 0.0
  %133 = vmatprep.subr.mxu0 0.0
  %134 = vmatpush1.msra.mxu0 0.0
  %135 = vmatprep.subr.mxu0 0.0
  %136 = vmatpush1.msra.mxu0 0.0
  %137 = vmatprep.subr.mxu0 0.0
  %138 = vmatpush1.msra.mxu0 0.0
  %139 = vmatprep.subr.mxu0 0.0
  %140 = vmatpush1.msra.mxu0 0.0
  %141 = vmatprep.subr.mxu0 0.0
  %142 = vmatpush1.msra.mxu0 0.0
  %143 = vmatprep.subr.mxu0 0.0
  %144 = vmatpush1.msra.mxu0 0.0
  %145 = vmatprep.subr.mxu0 0.0
  %146 = vmatpush1.msra.mxu0 0.0
  %147 = vmatprep.subr.mxu0 0.0
  %148 = vmatpush1.msra.mxu0 0.0
  %149 = vmatprep.subr.mxu0 0.0
  %150 = vmatpush1.msra.mxu0 0.0
  %151 = vmatprep.subr.mxu0 0.0
  %152 = vmatpush1.msra.mxu0 0.0
  %153 = vmatprep.subr.mxu0 0.0
  %154 = vmatpush1.msra.mxu0 0.0
  %155 = vmatprep.subr.mxu0 0.0
  %156 = vmatpush1.msra.mxu0 0.0
  %157 = vmatprep.subr.mxu0 0.0
  %158 = vmatpush1.msra.mxu0 0.0
  %159 = vmatprep.subr.mxu0 0.0
  %160 = vmatpush1.msra.mxu0 0.0
  %161 = vmatprep.subr.mxu0 0.0
  %162 = vmatpush1.msra.mxu0 0.0
  %163 = vmatprep.subr.mxu0 0.0
  %164 = vmatpush1.msra.mxu0 0.0
  %165 = vmatprep.subr.mxu0 0.0
  %166 = vmatpush1.msra.mxu0 0.0
  %167 = vmatprep.subr.mxu0 0.0
  %168 = vmatpush1.msra.mxu0 0.0
  %169 = vmatprep.subr.mxu0 0.0
  %170 = vmatpush1.msra.mxu0 0.0
  %171 = vmatprep.subr.mxu0 0.0
  %172 = vmatpush1.msra.mxu0 0.0
  %173 = vmatprep.mubr.f32.mxu0 0.0
  %174 = vmatmul.mubr.f32.gmra.mrb[0].mxu0 %v107
  %v175 = vpop.f32.mrb[0].mxu0
  %v176 = vadd.f32 %v102, %v175
  %v177 = vpop.f32.mrb[0].mxu0
  %178 = vdwg.mxu0
  %v179 = vld [vmem:[%s4] sm:$0x1]
  %v181 = vlaneseq
  %v182 = vshrl.u32 %v181, 7
  %v183 = vsub.s32 0, %v182
  %v184 = vrot.slane %v179, %v183
  %v186 = vadd.f32 %v176, %v184
  %v187 = vtanh.pop %v186
  %v188 = vld [vmem:[%s5] sm:$0xff]
  %v189 = vld [vmem:[%s5 + $0x8] sm:$0xff]
  %v190 = vld [vmem:[%s5 + $0x10] sm:$0xff]
  %v191 = vld [vmem:[%s5 + $0x18] sm:$0xff]
  %v192 = vld [vmem:[%s6] sm:$0x1]
  %v194 = vlaneseq
  %v195 = vshrl.u32 %v194, 7
  %v196 = vsub.s32 0, %v195
  %v197 = vrot.slane %v192, %v196
  %vm199 = vcmask 261120
  %v201 = vsel %vm199, %v187, 0
  %203 = vmatprep.subr.mxu0 0.0
  %204 = vmatpush1.msra.mxu0 %v188
  %205 = vmatprep.subr.mxu0 0.0
  %206 = vmatpush1.msra.mxu0 %v189
  %207 = vmatprep.subr.mxu0 0.0
  %208 = vmatpush1.msra.mxu0 %v190
  %209 = vmatprep.subr.mxu0 0.0
  %210 = vmatpush1.msra.mxu0 %v191
  %211 = vmatprep.subr.mxu0 0.0
  %212 = vmatpush1.msra.mxu0 0.0
  %213 = vmatprep.subr.mxu0 0.0
  %214 = vmatpush1.msra.mxu0 0.0
  %215 = vmatprep.subr.mxu0 0.0
  %216 = vmatpush1.msra.mxu0 0.0
  %217 = vmatprep.subr.mxu0 0.0
  %218 = vmatpush1.msra.mxu0 0.0
  %219 = vmatprep.subr.mxu0 0.0
  %220 = vmatpush1.msra.mxu0 0.0
  %221 = vmatprep.subr.mxu0 0.0
  %222 = vmatpush1.msra.mxu0 0.0
  %223 = vmatprep.subr.mxu0 0.0
  %224 = vmatpush1.msra.mxu0 0.0
  %225 = vmatprep.subr.mxu0 0.0
  %226 = vmatpush1.msra.mxu0 0.0
  %227 = vmatprep.subr.mxu0 0.0
  %228 = vmatpush1.msra.mxu0 0.0
  %229 = vmatprep.subr.mxu0 0.0
  %230 = vmatpush1.msra.mxu0 0.0
  %231 = vmatprep.subr.mxu0 0.0
  %232 = vmatpush1.msra.mxu0 0.0
  %233 = vmatprep.subr.mxu0 0.0
  %234 = vmatpush1.msra.mxu0 0.0
  %235 = vmatprep.subr.mxu0 0.0
  %236 = vmatpush1.msra.mxu0 0.0
  %237 = vmatprep.subr.mxu0 0.0
  %238 = vmatpush1.msra.mxu0 0.0
  %239 = vmatprep.subr.mxu0 0.0
  %240 = vmatpush1.msra.mxu0 0.0
  %241 = vmatprep.subr.mxu0 0.0
  %242 = vmatpush1.msra.mxu0 0.0
  %243 = vmatprep.subr.mxu0 0.0
  %244 = vmatpush1.msra.mxu0 0.0
  %245 = vmatprep.subr.mxu0 0.0
  %246 = vmatpush1.msra.mxu0 0.0
  %247 = vmatprep.subr.mxu0 0.0
  %248 = vmatpush1.msra.mxu0 0.0
  %249 = vmatprep.subr.mxu0 0.0
  %250 = vmatpush1.msra.mxu0 0.0
  %251 = vmatprep.subr.mxu0 0.0
  %252 = vmatpush1.msra.mxu0 0.0
  %253 = vmatprep.subr.mxu0 0.0
  %254 = vmatpush1.msra.mxu0 0.0
  %255 = vmatprep.subr.mxu0 0.0
  %256 = vmatpush1.msra.mxu0 0.0
  %257 = vmatprep.subr.mxu0 0.0
  %258 = vmatpush1.msra.mxu0 0.0
  %259 = vmatprep.subr.mxu0 0.0
  %260 = vmatpush1.msra.mxu0 0.0
  %261 = vmatprep.subr.mxu0 0.0
  %262 = vmatpush1.msra.mxu0 0.0
  %263 = vmatprep.subr.mxu0 0.0
  %264 = vmatpush1.msra.mxu0 0.0
  %265 = vmatprep.subr.mxu0 0.0
  %266 = vmatpush1.msra.mxu0 0.0
  %267 = vmatprep.mubr.f32.mxu0 0.0
  %268 = vmatmul.mubr.f32.gmra.mrb[0].mxu0 %v201
  %v269 = vpop.f32.mrb[0].mxu0
  %v270 = vadd.f32 %v197, %v269
  %v271 = vpop.f32.mrb[0].mxu0
  %272 = vdwg.mxu0
  %273 = vst [vmem:[%s7] sm:$0xff] %v270
  // Predicated region
  $region30: #{encoder_forward.1} parent=0 // pred_check
    _
  $region31: #{encoder_forward.1} parent=0 // pred_check_branch
    %275 = sbr.rel (0) target = $region33
  $region32: #{encoder_forward.1} parent=0 // pred_region
    _
  $region33: #{encoder_forward.1} parent=0 // pred_fallthru
    _
  // Predicated region
  $region34: #{encoder_forward.1} parent=0 // pred_check
    _
  $region35: #{encoder_forward.1} parent=0 // pred_check_branch
    %277 = sbr.rel (0) target = $region37
  $region36: #{encoder_forward.1} parent=0 // pred_region
    _
  $region37: #{encoder_forward.1} parent=0 // pred_fallthru
    _

</llo_original>
